<compile_context>
chip_gen: v5e
topology: v5e:2x2
jax: 0.10.0
libtpu: 0.0.40
codegen_flags: <defaults>
</compile_context>

<pallas_src>
import functools
import math

import jax
import jax.numpy as jnp
from jax import lax
from jax.experimental import pallas as pl
from jax.experimental.pallas import tpu as pltpu


# Large-negative finite causal mask value. Safe because kv tile 0 is always
# processed and every query row has column 0 unmasked, so the running max m
# and denominator l never stay degenerate.
_MASK_VALUE = -1e30


@functools.lru_cache(maxsize=None)
def _vmem_capacity_bytes():
    try:
        return int(pltpu.get_tpu_info().vmem_capacity_bytes)
    except Exception:  # emulator / older runtime: assume the small (v7x) budget
        return 64 * 1024 * 1024


def _vmem_limit_bytes():
    # ~75% of physical VMEM: ~48 MiB on v7x (64 MiB), ~96 MiB on v5e/v6e (128 MiB).
    return max(32 * 1024 * 1024,
               min(_vmem_capacity_bytes() * 3 // 4, 100 * 1024 * 1024))


def _tile(dim, target, align):
    """Largest multiple of `align` <= target that divides dim; else the full
    dim (a full-extent block is always layout-legal)."""
    if dim <= target:
        return dim
    t = (target // align) * align
    while t >= align:
        if dim % t == 0:
            return t
        t -= align
    return dim


# ----------------------------------------------------------------------------
# Kernel 1: tiled dense linear layer  y = x @ W + b   (c_attn and c_proj)
# ----------------------------------------------------------------------------
def _linear_kernel(x_ref, w_ref, b_ref, o_ref, acc_ref):
    @pl.when(pl.program_id(2) == 0)
    def _init():
        acc_ref[...] = jnp.zeros_like(acc_ref)

    acc_ref[...] += jnp.dot(x_ref[...], w_ref[...],
                            preferred_element_type=jnp.float32)

    @pl.when(pl.program_id(2) == pl.num_programs(2) - 1)
    def _finalize():
        o_ref[...] = (acc_ref[...] +
                      b_ref[...].astype(jnp.float32)).astype(o_ref.dtype)


def _default_linear_tiles():
    # v5e / v6e (128 MiB VMEM) can afford bigger tiles than v7x (64 MiB).
    if _vmem_capacity_bytes() >= 96 * 1024 * 1024:
        return 512, 1024, 1024
    return 512, 512, 512


def pallas_linear(x2d, w, b, *, tm=None, tn=None, tk=None):
    """x2d: (M, K), w: (K, N), b: (N,)  ->  (M, N) = x2d @ w + b."""
    M, K = x2d.shape
    N = w.shape[1]
    dtm, dtn, dtk = _default_linear_tiles()
    tm = _tile(M, tm or dtm, 8)       # sublane dims: multiples of 8
    tn = _tile(N, tn or dtn, 128)     # lane dims:    multiples of 128
    tk = _tile(K, tk or dtk, 128)
    itemsize = x2d.dtype.itemsize
    cost = pl.CostEstimate(
        flops=2 * M * N * K,
        transcendentals=0,
        bytes_accessed=(M * K * (N // tn) + K * N * (M // tm) + M * N + N)
        * itemsize)
    return pl.pallas_call(
        _linear_kernel,
        out_shape=jax.ShapeDtypeStruct((M, N), x2d.dtype),
        grid_spec=pltpu.PrefetchScalarGridSpec(
            num_scalar_prefetch=0,
            grid=(M // tm, N // tn, K // tk),
            in_specs=[
                pl.BlockSpec((tm, tk), lambda i, j, k: (i, k)),
                pl.BlockSpec((tk, tn), lambda i, j, k: (k, j)),
                pl.BlockSpec((1, tn), lambda i, j, k: (0, j)),
            ],
            out_specs=pl.BlockSpec((tm, tn), lambda i, j, k: (i, j)),
            scratch_shapes=[pltpu.VMEM((tm, tn), jnp.float32)]),
        compiler_params=pltpu.CompilerParams(
            dimension_semantics=("parallel", "parallel", "arbitrary"),
            vmem_limit_bytes=_vmem_limit_bytes()),
        cost_estimate=cost,
    )(x2d, w, b.reshape(1, N))


# ----------------------------------------------------------------------------
# Kernel 2: flash-style causal multi-head attention (online softmax)
#   grid = (B, T/tq, T/tk); heads handled inside the kernel (no XLA transposes)
# ----------------------------------------------------------------------------
def _flash_mha_kernel(q_ref, k_ref, v_ref, o_ref,
                      q_scr, m_scr, l_scr, acc_scr, *, tq, tk, n_head):
    qi = pl.program_id(1)
    ki = pl.program_id(2)
    C = q_ref.shape[-1]
    hd = C // n_head

    @pl.when(ki == 0)
    def _init():
        # Head-split q once per q tile (reused by every kv step).
        # Scale is already folded into the c_attn weights (no per-step mul).
        for h in range(n_head):
            q_scr[h] = q_ref[0, :, h * hd:(h + 1) * hd]
        m_scr[...] = jnp.full(m_scr.shape, _MASK_VALUE, jnp.float32)
        l_scr[...] = jnp.zeros(l_scr.shape, jnp.float32)
        acc_scr[...] = jnp.zeros(acc_scr.shape, jnp.float32)

    # Causal skip: only lower-triangle / diagonal kv tiles contribute.
    @pl.when(ki * tk <= (qi + 1) * tq - 1)
    def _compute():
        straddles = ki * tk + tk - 1 > qi * tq  # tile crosses the diagonal?

        def _mask(sv):
            row = qi * tq + lax.broadcasted_iota(jnp.int32, (tq, tk), 0)
            col = ki * tk + lax.broadcasted_iota(jnp.int32, (tq, tk), 1)
            return jnp.where(col <= row, sv, _MASK_VALUE)

        for h in range(n_head):  # static unroll over heads
            hs = slice(h * hd, (h + 1) * hd)
            k_h = k_ref[0, :, hs]                                  # (tk, hd)
            v_h = v_ref[0, :, hs]                                  # (tk, hd)
            # Contract on the trailing hd dim of both operands (no k.T / XLU
            # transpose); native-dtype MXU operands, f32 accumulation.
            s = lax.dot_general(q_scr[h], k_h, (((1,), (1,)), ((), ())),
                                preferred_element_type=jnp.float32)
            # Mask only tiles straddling the diagonal; interior tiles skip
            # the iota/compare/select VPU work entirely.
            s = lax.cond(straddles, _mask, lambda sv: sv, s)

            m_prev = m_scr[h]                                      # (tq, 1)
            m_new = jnp.maximum(m_prev, jnp.max(s, axis=-1, keepdims=True))
            alpha = jnp.exp(m_prev - m_new)
            p = jnp.exp(s - m_new)                                 # (tq, tk)
            l_scr[h] = alpha * l_scr[h] + jnp.sum(p, axis=-1, keepdims=True)
            acc_scr[h] = alpha * acc_scr[h] + jnp.dot(
                p.astype(v_h.dtype), v_h, preferred_element_type=jnp.float32)
            m_scr[h] = m_new

    @pl.when(ki == pl.num_programs(2) - 1)
    def _finalize():
        for h in range(n_head):
            out_h = acc_scr[h] / l_scr[h]          # exact normalization
            o_ref[0, :, h * hd:(h + 1) * hd] = out_h.astype(o_ref.dtype)


def pallas_flash_mha(qkv, n_head, *, tq=256, tk=128):
    """qkv: (B, T, 3C) packed c_attn output  ->  (B, T, C) attention output."""
    B, T, C3 = qkv.shape
    C = C3 // 3
    hd = C // n_head
    tq = _tile(T, tq, 8)
    tk = _tile(T, tk, 8)
    nq, nk = T // tq, T // tk

    def kv_block(qi, ki):
        # Clamp to the last causally-contributing kv tile: skipped
        # upper-triangle steps revisit the same block, so Pallas elides the DMA.
        return jnp.minimum(ki, ((qi + 1) * tq - 1) // tk)

    if C % 128 == 0:
        # Index q/k/v straight out of the packed qkv tensor: zero extra HBM
        # traffic for the head split (no XLA transpose or split at all).
        operands = (qkv, qkv, qkv)
        in_specs = [
            pl.BlockSpec((1, tq, C), lambda b, qi, ki: (b, qi, 0)),
            pl.BlockSpec((1, tk, C), lambda b, qi, ki: (b, kv_block(qi, ki), 1)),
            pl.BlockSpec((1, tk, C), lambda b, qi, ki: (b, kv_block(qi, ki), 2)),
        ]
    else:
        # A C-wide window of the 3C lane axis would violate the 128-lane block
        # rule; fall back to an XLA split (copies, but still no transposes).
        q, k, v = jnp.split(qkv, 3, axis=-1)
        operands = (q, k, v)
        in_specs = [
            pl.BlockSpec((1, tq, C), lambda b, qi, ki: (b, qi, 0)),
            pl.BlockSpec((1, tk, C), lambda b, qi, ki: (b, kv_block(qi, ki), 0)),
            pl.BlockSpec((1, tk, C), lambda b, qi, ki: (b, kv_block(qi, ki), 0)),
        ]

    itemsize = qkv.dtype.itemsize
    cost = pl.CostEstimate(
        flops=2 * B * T * T * C,                     # qk^T + pv, causal-halved
        transcendentals=B * n_head * T * T // 2,
        # q + out once; k/v each read ~(nq+1)/2 times (causal lower triangle).
        bytes_accessed=int(B * T * C * itemsize * (2 + (nq + 1))))

    kernel = functools.partial(_flash_mha_kernel, tq=tq, tk=tk, n_head=n_head)
    return pl.pallas_call(
        kernel,
        out_shape=jax.ShapeDtypeStruct((B, T, C), qkv.dtype),
        grid_spec=pltpu.PrefetchScalarGridSpec(
            num_scalar_prefetch=0,
            grid=(B, nq, nk),
            in_specs=in_specs,
            out_specs=pl.BlockSpec((1, tq, C), lambda b, qi, ki: (b, qi, 0)),
            scratch_shapes=[
                pltpu.VMEM((n_head, tq, hd), qkv.dtype),    # head-split q
                pltpu.VMEM((n_head, tq, 1), jnp.float32),   # running max  m
                pltpu.VMEM((n_head, tq, 1), jnp.float32),   # running sum  l
                pltpu.VMEM((n_head, tq, hd), jnp.float32),  # output accum
            ]),
        compiler_params=pltpu.CompilerParams(
            dimension_semantics=("parallel", "parallel", "arbitrary"),
            vmem_limit_bytes=_vmem_limit_bytes()),
        cost_estimate=cost,
    )(*operands)


# ----------------------------------------------------------------------------
# Full module forward (only free reshapes outside the kernels)
# ----------------------------------------------------------------------------
def causal_self_attention(x, params, n_head, *, tq=256, tk=128):
    """Forward of CausalSelfAttention. Weights stored as (in, out):
    w_attn (C, 3C), b_attn (3C,), w_proj (C, C), b_proj (C,)."""
    B, T, C = x.shape
    hd = C // n_head

    # Fold the 1/sqrt(head_dim) attention scale into the Q columns of c_attn
    # (free; removes a per-kv-step VPU multiply inside the attention kernel).
    scale = 1.0 / math.sqrt(hd)
    col_scale = jnp.concatenate(
        [jnp.full((C,), scale, params["w_attn"].dtype),
         jnp.ones((2 * C,), params["w_attn"].dtype)])
    w_attn = params["w_attn"] * col_scale
    b_attn = params["b_attn"] * col_scale

    qkv = pallas_linear(x.reshape(B * T, C), w_attn, b_attn)        # (B*T, 3C)
    out = pallas_flash_mha(qkv.reshape(B, T, 3 * C), n_head, tq=tq, tk=tk)
    y = pallas_linear(out.reshape(B * T, C),
                      params["w_proj"], params["b_proj"])
    return y.reshape(B, T, C)


# ----------------------------------------------------------------------------
# Pure-JAX reference (mirrors the PyTorch forward exactly)
# ----------------------------------------------------------------------------
def reference_forward(x, params, n_head):
    B, T, C = x.shape
    hd = C // n_head
    qkv = x @ params["w_attn"] + params["b_attn"]
    q, k, v = jnp.split(qkv, 3, axis=2)
    q = q.reshape(B, T, n_head, hd).transpose(0, 2, 1, 3)
    k = k.reshape(B, T, n_head, hd).transpose(0, 2, 1, 3)
    v = v.reshape(B, T, n_head, hd).transpose(0, 2, 1, 3)
    att = (q @ jnp.swapaxes(k, -2, -1)) / math.sqrt(hd)
    mask = jnp.tril(jnp.ones((T, T)))[None, None]
    att = jnp.where(mask == 0, -jnp.inf, att)
    att = jax.nn.softmax(att, axis=-1)
    out = att @ v
    out = out.transpose(0, 2, 1, 3).reshape(B, T, C)
    return out @ params["w_proj"] + params["b_proj"]


def _make_params(key, n_embd):
    k1, k2, k3, k4 = jax.random.split(key, 4)
    s = 1.0 / math.sqrt(n_embd)
    return {
        "w_attn": jax.random.uniform(k1, (n_embd, 3 * n_embd), jnp.float32, -s, s),
        "b_attn": jax.random.uniform(k2, (3 * n_embd,), jnp.float32, -s, s),
        "w_proj": jax.random.uniform(k3, (n_embd, n_embd), jnp.float32, -s, s),
        "b_proj": jax.random.uniform(k4, (n_embd,), jnp.float32, -s, s),
    }


if __name__ == "__main__":
    key = jax.random.PRNGKey(0)

    # Case 1: C % 128 != 0 (split fallback path), single kv tile.
    # Case 2: C % 128 == 0 (direct packed-qkv path) with small explicit tiles
    #         to exercise the multi-tile causal grid: clamped kv DMA, tile
    #         skipping, interior (unmasked) and diagonal (masked) tiles.
    cases = [
        dict(B=2, T=8, n_embd=32, n_head=4, tq=256, tk=128),
        dict(B=2, T=16, n_embd=128, n_head=4, tq=8, tk=8),
    ]
    for i, cfg in enumerate(cases):
        key, kx, kp = jax.random.split(key, 3)
        x = jax.random.normal(kx, (cfg["B"], cfg["T"], cfg["n_embd"]),
                              dtype=jnp.float32)
        params = _make_params(kp, cfg["n_embd"])

        y = causal_self_attention(x, params, cfg["n_head"],
                                  tq=cfg["tq"], tk=cfg["tk"])
        y = jax.block_until_ready(y)

        y_ref = reference_forward(x, params, cfg["n_head"])
        assert y.shape == x.shape
        assert jnp.allclose(y, y_ref, atol=1e-3, rtol=1e-3), (
            f"case {i}: mismatch vs reference")

    print("KERNEL_OK")
</pallas_src>

<mosaic_0001>
module attributes {stable_mosaic.version = 11 : i64} {
  func.func @_linear_kernel(%arg0: i32, %arg1: i32, %arg2: i32, %arg3: memref<16x32xf32, #tpu.memory_space<vmem>>, %arg4: memref<32x96xf32, #tpu.memory_space<vmem>>, %arg5: memref<1x96xf32, #tpu.memory_space<vmem>>, %arg6: memref<16x96xf32, #tpu.memory_space<vmem>>, %arg7: memref<16x96xf32, #tpu.memory_space<vmem>>) attributes {dimension_semantics = [#tpu.dimension_semantics<parallel>, #tpu.dimension_semantics<parallel>, #tpu.dimension_semantics<arbitrary>], iteration_bounds = array<i64: 1, 1, 1>, scalar_prefetch = 0 : i64, scratch_operands = 1 : i64, tpu.core_type = #tpu.core_type<tc>, window_params = [{transform_indices = @transform_0, window_bounds = array<i64: 16, 32>}, {transform_indices = @transform_1, window_bounds = array<i64: 32, 96>}, {transform_indices = @transform_2, window_bounds = array<i64: 1, 96>}, {transform_indices = @transform_3, window_bounds = array<i64: 16, 96>}]} {
    %c0_i32 = arith.constant 0 : i32
    %0 = arith.cmpi eq, %arg2, %c0_i32 : i32
    %1 = arith.extui %0 : i1 to i32
    %c0_i32_0 = arith.constant 0 : i32
    %2 = arith.cmpi ne, %1, %c0_i32_0 : i32
    scf.if %2 {
      %cst_10 = arith.constant 0.000000e+00 : f32
      %12 = vector.broadcast %cst_10 : f32 to vector<16x96xf32>
      %c0_11 = arith.constant 0 : index
      %c0_12 = arith.constant 0 : index
      %13 = vector.load %arg7[%c0_11, %c0_12] : memref<16x96xf32, #tpu.memory_space<vmem>>, vector<16x96xf32>
      tpu.vector_store %arg7[%c0_11, %c0_12], %12 {strides = array<i32>} : memref<16x96xf32, #tpu.memory_space<vmem>>, vector<16x96xf32>,
    } else {
    }
    %c0 = arith.constant 0 : index
    %c0_1 = arith.constant 0 : index
    %3 = vector.load %arg7[%c0, %c0_1] : memref<16x96xf32, #tpu.memory_space<vmem>>, vector<16x96xf32>
    %c0_2 = arith.constant 0 : index
    %c0_3 = arith.constant 0 : index
    %4 = vector.load %arg3[%c0_2, %c0_3] : memref<16x32xf32, #tpu.memory_space<vmem>>, vector<16x32xf32>
    %c0_4 = arith.constant 0 : index
    %c0_5 = arith.constant 0 : index
    %5 = vector.load %arg4[%c0_4, %c0_5] : memref<32x96xf32, #tpu.memory_space<vmem>>, vector<32x96xf32>
    %cst = arith.constant dense<0.000000e+00> : vector<16x96xf32>
    %6 = tpu.matmul %4, %5, %cst {dimension_numbers = #tpu.dot_dimension_numbers<[1], [0], [0], [1], [0, 0, 1, 1], [], []>} : vector<16x32xf32>, vector<32x96xf32>, vector<16x96xf32> -> vector<16x96xf32>
    %7 = arith.addf %3, %6 : vector<16x96xf32>
    %c0_6 = arith.constant 0 : index
    %c0_7 = arith.constant 0 : index
    %8 = vector.load %arg7[%c0_6, %c0_7] : memref<16x96xf32, #tpu.memory_space<vmem>>, vector<16x96xf32>
    tpu.vector_store %arg7[%c0_6, %c0_7], %7 {strides = array<i32>} : memref<16x96xf32, #tpu.memory_space<vmem>>, vector<16x96xf32>,
    %c0_i32_8 = arith.constant 0 : i32
    %9 = arith.cmpi eq, %arg2, %c0_i32_8 : i32
    %10 = arith.extui %9 : i1 to i32
    %c0_i32_9 = arith.constant 0 : i32
    %11 = arith.cmpi ne, %10, %c0_i32_9 : i32
    scf.if %11 {
      %c0_10 = arith.constant 0 : index
      %c0_11 = arith.constant 0 : index
      %12 = vector.load %arg7[%c0_10, %c0_11] : memref<16x96xf32, #tpu.memory_space<vmem>>, vector<16x96xf32>
      %c0_12 = arith.constant 0 : index
      %c0_13 = arith.constant 0 : index
      %13 = vector.load %arg5[%c0_12, %c0_13] : memref<1x96xf32, #tpu.memory_space<vmem>>, vector<1x96xf32>
      %14 = vector.broadcast %13 : vector<1x96xf32> to vector<16x96xf32>
      %15 = arith.addf %12, %14 : vector<16x96xf32>
      %c0_14 = arith.constant 0 : index
      %c0_15 = arith.constant 0 : index
      %16 = vector.load %arg6[%c0_14, %c0_15] : memref<16x96xf32, #tpu.memory_space<vmem>>, vector<16x96xf32>
      tpu.vector_store %arg6[%c0_14, %c0_15], %15 {strides = array<i32>} : memref<16x96xf32, #tpu.memory_space<vmem>>, vector<16x96xf32>,
    } else {
    }
    return
  }
  func.func @transform_0(%arg0: i32, %arg1: i32, %arg2: i32) -> (i32, i32) {
    %c0_i32 = arith.constant 0 : i32
    return %arg0, %arg2 : i32, i32
  }
  func.func @transform_1(%arg0: i32, %arg1: i32, %arg2: i32) -> (i32, i32) {
    %c0_i32 = arith.constant 0 : i32
    return %arg2, %arg1 : i32, i32
  }
  func.func @transform_2(%arg0: i32, %arg1: i32, %arg2: i32) -> (i32, i32) {
    %c0_i32 = arith.constant 0 : i32
    %c0_i32_0 = arith.constant 0 : i32
    return %c0_i32, %arg1 : i32, i32
  }
  func.func @transform_3(%arg0: i32, %arg1: i32, %arg2: i32) -> (i32, i32) {
    %c0_i32 = arith.constant 0 : i32
    return %arg0, %arg1 : i32, i32
  }
}

</mosaic_0001>

<llo_original>
// kernel: tpu_custom_call.1
$region0: #{tpu_custom_call.1}
  #allocation0 [shape = 'u32[]', space=smem, size = 0x4, offset = 0x4, fixed_abs, tag = 'smem constant byte address 0x4 - core index']
  #allocation1 [shape = 'u32[72,128]{1,0:T(1,128)}', space=vmem, size = 0x9000, scoped, tag = 'internal scratch']
  #allocation2 [shape = 'f32[16,96]{1,0:T(8,128)}', space=vmem, size = 0x2000, scoped, tag = 'scratch operand']
  %s0 = inlined_call_operand.hbm [shape: f32[16,32], index: 0, kind: input, shape index: {}]
  %s1 = inlined_call_operand.hbm [shape: f32[32,96], index: 1, kind: input, shape index: {}]
  %s2 = inlined_call_operand.vmem [shape: f32[1,96], index: 2, kind: input, shape index: {}]
  %s3 = inlined_call_operand.hbm [shape: f32[16,96], index: 3, kind: output, shape index: {}]
  %s4 = sld [smem:[#allocation0]]
  $region38: #{tpu_custom_call.1} parent=0
    _
  %s6 = ssub.s32 1, %s4
  %s7 = scalar_select 0, %s6, %s4
  $region1: #{tpu_custom_call.1} parent=0
    #allocation3 [shape = 'u8[8192]{0}', space=vmem, size = 0x2000, scoped, tag = 'input window, operand 0, single buffered']
    #allocation4 [shape = 's32[1]{0}', space=sflag, size = 0x4, scoped, tag = 'scoped memory for tpu_custom_call.1']
    #allocation5 [shape = 's32[1]{0}', space=sflag, size = 0x4, scoped, tag = 'scoped memory for tpu_custom_call.1']
    #allocation6 [shape = 'u8[16384]{0}', space=vmem, size = 0x4000, scoped, tag = 'input window, operand 1, single buffered']
    #allocation7 [shape = 's32[1]{0}', space=sflag, size = 0x4, scoped, tag = 'scoped memory for tpu_custom_call.1']
    #allocation8 [shape = 'u8[8192]{0}', space=vmem, size = 0x2000, scoped, tag = 'output window, operand 0, single buffered']
    %8 = vsyncpa [#allocation4], 0
    %9 = vsyncpa [#allocation7], 0
    %10 = vsyncpa [#allocation5], 0
    // Predicated region
    $region2: #{tpu_custom_call.1} parent=1 // pred_check
      _
    $region3: #{tpu_custom_call.1} parent=1 // pred_check_branch
      %12 = sbr.rel (0) target = $region5
    $region4: #{tpu_custom_call.1} parent=1 // pred_region
      %14 = vsyncadd [#allocation4], 0
      %s15 = sshll.u32 %s0, 4
      %s16 = int_to_ptr.hbm [resolvable:$true] %s15
      %s17 = sshll.u32 [#allocation3], 4
      %s18 = int_to_ptr.vmem [resolvable:$true] %s17
      %23 = dma.hbm_to_vmem [thread:$0]  %s16, 256, %s18, [#allocation4], 128, 128, 8
    $region5: #{tpu_custom_call.1} parent=1 // pred_fallthru
      _
    // Predicated region
    $region6: #{tpu_custom_call.1} parent=1 // pred_check
      _
    $region7: #{tpu_custom_call.1} parent=1 // pred_check_branch
      %25 = sbr.rel (0) target = $region9
    $region8: #{tpu_custom_call.1} parent=1 // pred_region
      %27 = vsyncadd [#allocation7], 0
      %s28 = sshll.u32 %s1, 4
      %s29 = int_to_ptr.hbm [resolvable:$true] %s28
      %s30 = sshll.u32 [#allocation6], 4
      %s31 = int_to_ptr.vmem [resolvable:$true] %s30
      %36 = dma.hbm_to_vmem [thread:$0]  %s29, 512, %s31, [#allocation7], 128, 128, 8
    $region9: #{tpu_custom_call.1} parent=1 // pred_fallthru
      _
    // Predicated region
    $region10: #{tpu_custom_call.1} parent=1 // pred_check
      _
    $region11: #{tpu_custom_call.1} parent=1 // pred_check_branch
      %38 = sbr.rel (0) target = $region13
    $region12: #{tpu_custom_call.1} parent=1 // pred_region
      _
    $region13: #{tpu_custom_call.1} parent=1 // pred_fallthru
      _
    // Predicated region
    $region14: #{tpu_custom_call.1} parent=1 // pred_check
      _
    $region15: #{tpu_custom_call.1} parent=1 // pred_check_branch
      %40 = sbr.rel (0) target = $region17
    $region16: #{tpu_custom_call.1} parent=1 // pred_region
      %42 = dma.done [#allocation4], 256
    $region17: #{tpu_custom_call.1} parent=1 // pred_fallthru
      _
    // Predicated region
    $region18: #{tpu_custom_call.1} parent=1 // pred_check
      _
    $region19: #{tpu_custom_call.1} parent=1 // pred_check_branch
      %44 = sbr.rel (0) target = $region21
    $region20: #{tpu_custom_call.1} parent=1 // pred_region
      %46 = dma.done [#allocation7], 512
    $region21: #{tpu_custom_call.1} parent=1 // pred_fallthru
      _
    %p47 = scmp.eq.s32.totalorder 0, 0
    // Predicated region
    $region22: #{tpu_custom_call.1} parent=1 // pred_check
      %p48 = pneg %p47
    $region23: #{tpu_custom_call.1} parent=1 // pred_check_branch
      %50 = sbr.rel (%p48) target = $region25
    $region24: #{tpu_custom_call.1} parent=1 // pred_region
      %vm51 = vcmask 785408
      %52 = vst.msk [vmem:[#allocation2] sm:$0xff] %vm51, 0.0
      %53 = vst.msk [vmem:[#allocation2 + $0x8] sm:$0xff] %vm51, 0.0
    $region25: #{tpu_custom_call.1} parent=1 // pred_fallthru
      _
    %v54 = vld [vmem:[#allocation2] sm:$0xff]
    %v55 = vld [vmem:[#allocation2 + $0x8] sm:$0xff]
    %v56 = vld [vmem:[#allocation3] sm:$0xff]
    %v57 = vld [vmem:[#allocation3 + $0x8] sm:$0xff]
    %v58 = vld [vmem:[#allocation6] sm:$0xff]
    %v59 = vld [vmem:[#allocation6 + $0x8] sm:$0xff]
    %v60 = vld [vmem:[#allocation6 + $0x10] sm:$0xff]
    %v61 = vld [vmem:[#allocation6 + $0x18] sm:$0xff]
    %vm62 = vcmask 261120
    %v64 = vsel %vm62, %v56, 0
    %v67 = vsel %vm62, %v57, 0
    %69 = vmatpush.msra.mxu0 0.0
    %70 = vmatpush.msra.mxu0 0.0
    %71 = vmatpush.msra.mxu0 0.0
    %72 = vmatpush.msra.mxu0 0.0
    %73 = vmatpush.msra.mxu0 0.0
    %74 = vmatpush.msra.mxu0 0.0
    %75 = vmatpush.msra.mxu0 0.0
    %76 = vmatpush.msra.mxu0 0.0
    %77 = vmatpush.msra.mxu0 0.0
    %78 = vmatpush.msra.mxu0 0.0
    %79 = vmatpush.msra.mxu0 0.0
    %80 = vmatpush.msra.mxu0 0.0
    %81 = vmatpush.msra.mxu0 %v61
    %82 = vmatpush.msra.mxu0 %v60
    %83 = vmatpush.msra.mxu0 %v59
    %84 = vmatpush.msra.mxu0 %v58
    %85 = vmatmul.f32.gmra.mxu0 %v64
    %v86 = vpop.f32.mrf.mxu0
    %v87 = vadd.f32 0.0, %v86
    %88 = vmatmul.f32.gmra.mxu0 %v67
    %v89 = vpop.f32.mrf.mxu0
    %v90 = vadd.f32 0.0, %v89
    %91 = vdwg.mxu0
    %v92 = vadd.f32 %v54, %v87
    %v93 = vadd.f32 %v55, %v90
    %vm94 = vcmask 785408
    %95 = vst.msk [vmem:[#allocation2] sm:$0xff] %vm94, %v92
    %96 = vst.msk [vmem:[#allocation2 + $0x8] sm:$0xff] %vm94, %v93
    // Predicated region
    $region26: #{tpu_custom_call.1} parent=1 // pred_check
      %p97 = pneg %p47
    $region27: #{tpu_custom_call.1} parent=1 // pred_check_branch
      %99 = sbr.rel (%p97) target = $region29
    $region28: #{tpu_custom_call.1} parent=1 // pred_region
      %v100 = vld [vmem:[#allocation2] sm:$0xff]
      %v101 = vld [vmem:[#allocation2 + $0x8] sm:$0xff]
      %v102 = vld [vmem:[%s2] sm:$0x1]
      %v104 = vperm.slane %v102, 0
      %v106 = vadd.f32 %v100, %v104
      %v107 = vadd.f32 %v101, %v104
      %108 = vst.msk [vmem:[#allocation8] sm:$0xff] %vm94, %v106
      %109 = vst.msk [vmem:[#allocation8 + $0x8] sm:$0xff] %vm94, %v107
    $region29: #{tpu_custom_call.1} parent=1 // pred_fallthru
      _
    // Predicated region
    $region30: #{tpu_custom_call.1} parent=1 // pred_check
      _
    $region31: #{tpu_custom_call.1} parent=1 // pred_check_branch
      %111 = sbr.rel (0) target = $region33
    $region32: #{tpu_custom_call.1} parent=1 // pred_region
      %113 = vsyncadd [#allocation5], 0
      %s114 = sshll.u32 [#allocation8], 4
      %s115 = int_to_ptr.vmem [resolvable:$true] %s114
      %s116 = sshll.u32 %s3, 4
      %s117 = int_to_ptr.hbm [resolvable:$true] %s116
      %122 = dma.vmem_to_hbm [thread:$0]  %s115, 256, %s117, [#allocation5], 128, 128, 8
    $region33: #{tpu_custom_call.1} parent=1 // pred_fallthru
      _
    // Predicated region
    $region34: #{tpu_custom_call.1} parent=1 // pred_check
      _
    $region35: #{tpu_custom_call.1} parent=1 // pred_check_branch
      %124 = sbr.rel (0) target = $region37
    $region36: #{tpu_custom_call.1} parent=1 // pred_region
      %126 = dma.done [#allocation5], 256
    $region37: #{tpu_custom_call.1} parent=1 // pred_fallthru
      _
    %127 = vsyncpa [#allocation4], 1
    %128 = vsyncpa [#allocation7], 1
    %129 = vsyncpa [#allocation5], 1

</llo_original>
